<compile_context>
chip_gen: v5e
topology: v5e:2x2
jax: 0.10.0
libtpu: 0.0.40
codegen_flags: <defaults>
</compile_context>

<pallas_src>
import functools

import jax
import jax.numpy as jnp
from jax.experimental import pallas as pl
from jax.experimental.pallas import tpu as pltpu


def _round_up(a: int, b: int) -> int:
    return (a + b - 1) // b * b


def _cdiv(a: int, b: int) -> int:
    return (a + b - 1) // b


def _vmem_capacity_bytes() -> int:
    """Physical VMEM of the current TPU generation (conservative fallback)."""
    try:
        info = pltpu.get_tpu_info()
        cap = int(getattr(info, "vmem_capacity_bytes", 0))
        if cap > 0:
            return cap
    except Exception:
        pass
    return 64 * 1024 * 1024  # v7x per-TC size; safe lower bound everywhere.


# ----------------------------------------------------------------------------
# Kernels
# ----------------------------------------------------------------------------
def _expert_kernel_resident(x_ref, w13_ref, w2t_ref, o_ref, *, inter_p: int):
    """Whole expert in one body: weights are pinned in VMEM, no K reduction axis."""
    x = x_ref[...]
    # Fused up-projection: one MXU matmul produces both h1 and h3.
    h13 = jnp.dot(x, w13_ref[...], preferred_element_type=jnp.float32)
    h1 = h13[:, :inter_p]
    h3 = h13[:, inter_p:]
    # SwiGLU gating in f32 (VPU + EUP).
    h = (h1 * jax.nn.sigmoid(h1)) * h3
    o_ref[...] = jnp.dot(
        h.astype(w2t_ref.dtype), w2t_ref[...], preferred_element_type=jnp.float32
    ).astype(o_ref.dtype)


def _expert_kernel_streamed(x_ref, w13_ref, w2t_ref, o_ref, *, tk: int):
    """K-streamed path: accumulate partial down-projection directly into o_ref."""
    k = pl.program_id(1)

    @pl.when(k == 0)
    def _():
        o_ref[...] = jnp.zeros_like(o_ref)

    x = x_ref[...]
    # Fused up-projection for this K block: columns [0:tk]=w1_k, [tk:2tk]=w3_k.
    h13 = jnp.dot(x, w13_ref[...], preferred_element_type=jnp.float32)
    h1 = h13[:, :tk]
    h3 = h13[:, tk:]
    h = (h1 * jax.nn.sigmoid(h1)) * h3
    # f32 accumulation directly into the (resident-across-k) output block.
    o_ref[...] += jnp.dot(
        h.astype(w2t_ref.dtype), w2t_ref[...], preferred_element_type=jnp.float32
    )


# ----------------------------------------------------------------------------
# One-time weight preparation
# ----------------------------------------------------------------------------
def prepare_expert_weights(w1, w2, w3, *, max_resident_weight_bytes=None):
    """Transpose to [in, out], pad, fuse w1/w3 (per-K-block interleave), cast bf16.

    Args:
      w1: [inter_dim, dim]  (PyTorch [out, in] layout)
      w2: [dim, inter_dim]
      w3: [inter_dim, dim]
      max_resident_weight_bytes: override for the VMEM-residency decision
        (0 forces the streamed layout; None = 40% of physical VMEM).
    Returns:
      (w13_bf16 [dim_p, 2*inter_p], w2t_bf16 [inter_p, dim_p], tk)
      tk == inter_p  <=>  the expert is small enough to keep resident in VMEM.
    """
    inter_dim, dim = w1.shape
    dim_p = _round_up(dim, 128)

    vmem_cap = _vmem_capacity_bytes()
    if max_resident_weight_bytes is None:
        max_resident_weight_bytes = int(0.4 * vmem_cap)

    inter_p_min = _round_up(inter_dim, 128)
    weight_bytes = 6 * dim_p * inter_p_min  # w13 (4*d*i) + w2t (2*d*i) in bf16

    if weight_bytes <= max_resident_weight_bytes:
        # Resident layout: single K block covering the whole inter dim.
        inter_p = inter_p_min
        tk = inter_p
    else:
        # Streamed layout: pad inter to a 512 multiple so tk >= 512 (full MXU).
        inter_p = _round_up(inter_dim, 512)
        tk = 512
    nk = inter_p // tk

    def pad2(a, r, c):
        return jnp.pad(a, ((0, r - a.shape[0]), (0, c - a.shape[1])))

    w1t = pad2(w1.T, dim_p, inter_p)  # [dim_p, inter_p]
    w3t = pad2(w3.T, dim_p, inter_p)  # [dim_p, inter_p]
    w2t = pad2(w2.T, inter_p, dim_p)  # [inter_p, dim_p]

    # Interleave per K block so block k of the fused weight is [w1_k | w3_k].
    # (With nk == 1 this is simply [w1t | w3t].)
    w13 = jnp.concatenate(
        [w1t.reshape(dim_p, nk, tk), w3t.reshape(dim_p, nk, tk)], axis=2
    ).reshape(dim_p, 2 * inter_p)

    return w13.astype(jnp.bfloat16), w2t.astype(jnp.bfloat16), tk


# ----------------------------------------------------------------------------
# Forward
# ----------------------------------------------------------------------------
def _resident_budget(tm, dim_p, inter_p):
    return (
        6 * dim_p * inter_p            # resident weights (bf16, single buffer)
        + 2 * tm * dim_p * 2           # x tiles (bf16, double-buffered)
        + 2 * tm * dim_p * 4           # out tiles (f32)
        + tm * 2 * inter_p * 4         # h13 temp (f32)
        + tm * inter_p * 4             # h temp (f32)
        + tm * inter_p * 2             # h bf16 cast
    )


def _streamed_budget(tm, tk, dim_p):
    return (
        2 * tm * dim_p * 2             # x tiles (bf16, double-buffered)
        + 2 * dim_p * (2 * tk) * 2     # w13 tiles
        + 2 * tk * dim_p * 2           # w2t tiles
        + 2 * tm * dim_p * 4           # out tiles (f32 accumulator)
        + tm * (2 * tk) * 4            # h13 temp
        + tm * tk * 4 + tm * tk * 2    # h temps (f32 + bf16)
    )


def expert_forward(x, w13, w2t, tk):
    """Pallas Expert.forward: y = w2(silu(w1 x) * w3 x).

    Args:
      x:   [..., dim] float32
      w13: [dim_p, 2*inter_p] bf16 (from prepare_expert_weights)
      w2t: [inter_p, dim_p]   bf16
      tk:  int, K tile size used when fusing w13 (tk == inter_p => resident path)
    Returns:
      [..., dim] float32
    """
    dim = x.shape[-1]
    inter_p, dim_p = w2t.shape
    assert dim <= dim_p and w13.shape == (dim_p, 2 * inter_p)
    nk = inter_p // tk
    resident = nk == 1

    lead_shape = x.shape[:-1]
    x2d = x.reshape(-1, dim)
    n = x2d.shape[0]

    vmem_cap = _vmem_capacity_bytes()
    usable = max(vmem_cap - 16 * 1024 * 1024, 32 * 1024 * 1024)

    # --- token tile selection (multiple of 16 for bf16 sublane packing) ------
    if (not resident) and n >= 1024:
        tm = 512  # raise arithmetic intensity vs streamed weights (v6e roofline)
    elif n >= 256:
        tm = 256
    else:
        tm = _round_up(max(n, 16), 16)
    # v7x megacore: prefer >= 2 token tiles on the parallel axis when n allows.
    if n > 16 and _cdiv(n, tm) == 1:
        tm = max(16, _round_up(_cdiv(n, 2), 16))
    # Shrink tm until the VMEM budget fits (generation-aware, not a fixed clamp).
    budget_fn = (
        (lambda t: _resident_budget(t, dim_p, inter_p))
        if resident
        else (lambda t: _streamed_budget(t, tk, dim_p))
    )
    while tm > 16 and budget_fn(tm) > usable:
        tm = max(16, _round_up(tm // 2, 16))

    n_pad = _round_up(n, tm)
    nm = n_pad // tm

    # Pad tokens/features with zeros (padded inter cols give silu(0)*0 = 0 and
    # zero w2 rows, so they contribute nothing); skip when already aligned.
    if n_pad == n and dim_p == dim:
        x_in = x2d.astype(jnp.bfloat16)
    else:
        x_in = jnp.pad(x2d, ((0, n_pad - n), (0, dim_p - dim))).astype(jnp.bfloat16)

    budget = budget_fn(tm)
    vmem_limit = min(max(int(budget * 1.3), 32 * 1024 * 1024), usable)

    weight_bytes = dim_p * 2 * inter_p * 2 + inter_p * dim_p * 2
    cost = pl.CostEstimate(
        flops=6 * n_pad * dim_p * inter_p,
        transcendentals=n_pad * inter_p,
        bytes_accessed=(
            n_pad * dim_p * 2                               # x (bf16)
            + (1 if resident else nm) * weight_bytes        # weights (re-streamed per m tile if streamed)
            + n_pad * dim_p * 4                             # out (f32)
        ),
    )

    if resident:
        out_p = pl.pallas_call(
            functools.partial(_expert_kernel_resident, inter_p=inter_p),
            out_shape=jax.ShapeDtypeStruct((n_pad, dim_p), jnp.float32),
            grid_spec=pltpu.PrefetchScalarGridSpec(
                num_scalar_prefetch=0,
                grid=(nm,),
                in_specs=[
                    pl.BlockSpec((tm, dim_p), lambda m: (m, 0)),          # x tile
                    pl.BlockSpec((dim_p, 2 * inter_p), lambda m: (0, 0)),  # full w13 (pinned)
                    pl.BlockSpec((inter_p, dim_p), lambda m: (0, 0)),      # full w2t (pinned)
                ],
                out_specs=pl.BlockSpec((tm, dim_p), lambda m: (m, 0)),
            ),
            compiler_params=pltpu.CompilerParams(
                dimension_semantics=("parallel",),
                vmem_limit_bytes=vmem_limit,
            ),
            cost_estimate=cost,
        )(x_in, w13, w2t)
    else:
        out_p = pl.pallas_call(
            functools.partial(_expert_kernel_streamed, tk=tk),
            out_shape=jax.ShapeDtypeStruct((n_pad, dim_p), jnp.float32),
            grid_spec=pltpu.PrefetchScalarGridSpec(
                num_scalar_prefetch=0,
                grid=(nm, nk),
                in_specs=[
                    pl.BlockSpec((tm, dim_p), lambda m, k: (m, 0)),       # x tile
                    pl.BlockSpec((dim_p, 2 * tk), lambda m, k: (0, k)),   # fused w1|w3 tile
                    pl.BlockSpec((tk, dim_p), lambda m, k: (k, 0)),       # w2 tile
                ],
                out_specs=pl.BlockSpec((tm, dim_p), lambda m, k: (m, 0)),
            ),
            compiler_params=pltpu.CompilerParams(
                dimension_semantics=("parallel", "arbitrary"),
                vmem_limit_bytes=vmem_limit,
            ),
            cost_estimate=cost,
        )(x_in, w13, w2t)

    if n_pad == n and dim_p == dim:
        out = out_p
    else:
        out = out_p[:n, :dim]
    return out.reshape(*lead_shape, dim)


def _reference(x, w1, w2, w3):
    """Pure-JAX f32 reference mirroring the PyTorch forward."""
    h1 = x @ w1.T
    h3 = x @ w3.T
    h = (h1 * jax.nn.sigmoid(h1)) * h3
    return h @ w2.T


if __name__ == "__main__":
    key = jax.random.PRNGKey(0)
    k_x, k_w1, k_w2, k_w3, k_w1b, k_w2b, k_w3b = jax.random.split(key, 7)

    # Small shapes consistent with the module: batch=2, seq=8, dim=32, inter_dim=64.
    batch, seq, dim, inter_dim = 2, 8, 32, 64

    x = jax.random.normal(k_x, (batch, seq, dim), dtype=jnp.float32)
    # PyTorch [out_features, in_features] layout.
    w1 = jax.random.normal(k_w1, (inter_dim, dim), dtype=jnp.float32) * 0.05
    w2 = jax.random.normal(k_w2, (dim, inter_dim), dtype=jnp.float32) * 0.05
    w3 = jax.random.normal(k_w3, (inter_dim, dim), dtype=jnp.float32) * 0.05

    # --- Path 1: resident-weight kernel (default for mimi-scale experts) -----
    w13, w2t, tk = prepare_expert_weights(w1, w2, w3)   # one-time prep, not per call
    w13, w2t = jax.block_until_ready((w13, w2t))
    out = jax.block_until_ready(expert_forward(x, w13, w2t, tk))
    ref = _reference(x, w1, w2, w3)
    assert out.shape == ref.shape == (batch, seq, dim)
    # bf16 matmul inputs with f32 accumulation -> slightly looser tolerance than f32.
    assert jnp.allclose(out, ref, atol=3e-2, rtol=3e-2), (
        f"resident path mismatch; max abs diff = {jnp.max(jnp.abs(out - ref))}"
    )

    # --- Path 2: streamed-weight kernel (forced, nk > 1) to exercise K grid --
    inter_dim_b = 600  # pads to 1024 -> two K blocks of 512
    w1b = jax.random.normal(k_w1b, (inter_dim_b, dim), dtype=jnp.float32) * 0.05
    w2b = jax.random.normal(k_w2b, (dim, inter_dim_b), dtype=jnp.float32) * 0.05
    w3b = jax.random.normal(k_w3b, (inter_dim_b, dim), dtype=jnp.float32) * 0.05
    w13b, w2tb, tkb = prepare_expert_weights(
        w1b, w2b, w3b, max_resident_weight_bytes=0
    )
    w13b, w2tb = jax.block_until_ready((w13b, w2tb))
    out_b = jax.block_until_ready(expert_forward(x, w13b, w2tb, tkb))
    ref_b = _reference(x, w1b, w2b, w3b)
    assert out_b.shape == ref_b.shape == (batch, seq, dim)
    assert jnp.allclose(out_b, ref_b, atol=3e-2, rtol=3e-2), (
        f"streamed path mismatch; max abs diff = {jnp.max(jnp.abs(out_b - ref_b))}"
    )

    print("KERNEL_OK")
</pallas_src>

<mosaic_0001>
module attributes {stable_mosaic.version = 11 : i64} {
  func.func @_expert_kernel_resident(%arg0: i32, %arg1: memref<16x128xbf16, #tpu.memory_space<vmem>>, %arg2: memref<128x256xbf16, #tpu.memory_space<vmem>>, %arg3: memref<128x128xbf16, #tpu.memory_space<vmem>>, %arg4: memref<16x128xf32, #tpu.memory_space<vmem>>) attributes {dimension_semantics = [#tpu.dimension_semantics<parallel>], iteration_bounds = array<i64: 1>, scalar_prefetch = 0 : i64, scratch_operands = 0 : i64, tpu.core_type = #tpu.core_type<tc>, window_params = [{transform_indices = @transform_0, window_bounds = array<i64: 16, 128>}, {pipeline_mode = #tpu.pipeline_mode<synchronous>, transform_indices = @transform_1, window_bounds = array<i64: 128, 256>}, {pipeline_mode = #tpu.pipeline_mode<synchronous>, transform_indices = @transform_2, window_bounds = array<i64: 128, 128>}, {transform_indices = @transform_3, window_bounds = array<i64: 16, 128>}]} {
    %c0 = arith.constant 0 : index
    %c0_0 = arith.constant 0 : index
    %0 = vector.load %arg1[%c0, %c0_0] : memref<16x128xbf16, #tpu.memory_space<vmem>>, vector<16x128xbf16>
    %c0_1 = arith.constant 0 : index
    %c0_2 = arith.constant 0 : index
    %1 = vector.load %arg2[%c0_1, %c0_2] : memref<128x256xbf16, #tpu.memory_space<vmem>>, vector<128x256xbf16>
    %cst = arith.constant dense<0.000000e+00> : vector<16x256xf32>
    %2 = tpu.matmul %0, %1, %cst {dimension_numbers = #tpu.dot_dimension_numbers<[1], [0], [0], [1], [0, 0, 1, 1], [], []>} : vector<16x128xbf16>, vector<128x256xbf16>, vector<16x256xf32> -> vector<16x256xf32>
    %3 = vector.extract_strided_slice %2 {offsets = [0, 0], sizes = [16, 128], strides = [1, 1]} : vector<16x256xf32> to vector<16x128xf32>
    %4 = vector.extract_strided_slice %2 {offsets = [0, 128], sizes = [16, 128], strides = [1, 1]} : vector<16x256xf32> to vector<16x128xf32>
    %5 = arith.negf %3 : vector<16x128xf32>
    %6 = math.exp %5 : vector<16x128xf32>
    %cst_3 = arith.constant 1.000000e+00 : f32
    %7 = vector.broadcast %cst_3 : f32 to vector<16x128xf32>
    %8 = arith.addf %7, %6 : vector<16x128xf32>
    %9 = arith.divf %7, %8 : vector<16x128xf32>
    %10 = arith.mulf %3, %9 : vector<16x128xf32>
    %11 = arith.mulf %10, %4 : vector<16x128xf32>
    %12 = arith.truncf %11 : vector<16x128xf32> to vector<16x128xbf16>
    %c0_4 = arith.constant 0 : index
    %c0_5 = arith.constant 0 : index
    %13 = vector.load %arg3[%c0_4, %c0_5] : memref<128x128xbf16, #tpu.memory_space<vmem>>, vector<128x128xbf16>
    %cst_6 = arith.constant dense<0.000000e+00> : vector<16x128xf32>
    %14 = tpu.matmul %12, %13, %cst_6 {dimension_numbers = #tpu.dot_dimension_numbers<[1], [0], [0], [1], [0, 0, 1, 1], [], []>} : vector<16x128xbf16>, vector<128x128xbf16>, vector<16x128xf32> -> vector<16x128xf32>
    %c0_7 = arith.constant 0 : index
    %c0_8 = arith.constant 0 : index
    %15 = vector.load %arg4[%c0_7, %c0_8] : memref<16x128xf32, #tpu.memory_space<vmem>>, vector<16x128xf32>
    tpu.vector_store %arg4[%c0_7, %c0_8], %14 {strides = array<i32>} : memref<16x128xf32, #tpu.memory_space<vmem>>, vector<16x128xf32>,
    return
  }
  func.func @transform_0(%arg0: i32) -> (i32, i32) {
    %c0_i32 = arith.constant 0 : i32
    %c0_i32_0 = arith.constant 0 : i32
    return %arg0, %c0_i32 : i32, i32
  }
  func.func @transform_1(%arg0: i32) -> (i32, i32) {
    %c0_i32 = arith.constant 0 : i32
    %c0_i32_0 = arith.constant 0 : i32
    %c0_i32_1 = arith.constant 0 : i32
    return %c0_i32, %c0_i32_0 : i32, i32
  }
  func.func @transform_2(%arg0: i32) -> (i32, i32) {
    %c0_i32 = arith.constant 0 : i32
    %c0_i32_0 = arith.constant 0 : i32
    %c0_i32_1 = arith.constant 0 : i32
    return %c0_i32, %c0_i32_0 : i32, i32
  }
  func.func @transform_3(%arg0: i32) -> (i32, i32) {
    %c0_i32 = arith.constant 0 : i32
    %c0_i32_0 = arith.constant 0 : i32
    return %arg0, %c0_i32 : i32, i32
  }
}

</mosaic_0001>

<llo_original>
// kernel: tpu_custom_call.1
$region0: #{tpu_custom_call.1}
  #allocation0 [shape = 'u32[]', space=smem, size = 0x4, offset = 0x4, fixed_abs, tag = 'smem constant byte address 0x4 - core index']
  #allocation1 [shape = 'u32[72,128]{1,0:T(1,128)}', space=vmem, size = 0x9000, scoped, tag = 'internal scratch']
  %s0 = inlined_call_operand.hbm [shape: bf16[16,128], index: 0, kind: input, shape index: {}]
  %s1 = inlined_call_operand.hbm [shape: bf16[128,256], index: 1, kind: input, shape index: {}]
  %s2 = inlined_call_operand.hbm [shape: bf16[128,128], index: 2, kind: input, shape index: {}]
  %s3 = inlined_call_operand.hbm [shape: f32[16,128], index: 3, kind: output, shape index: {}]
  %s4 = sld [smem:[#allocation0]]
  $region34: #{tpu_custom_call.1} parent=0
    _
  %s6 = ssub.s32 1, %s4
  %s7 = scalar_select 0, %s6, %s4
  $region1: #{tpu_custom_call.1} parent=0
    #allocation2 [shape = 'u8[4096]{0}', space=vmem, size = 0x1000, scoped, tag = 'input window, operand 0, single buffered']
    #allocation3 [shape = 's32[1]{0}', space=sflag, size = 0x4, scoped, tag = 'scoped memory for tpu_custom_call.1']
    #allocation4 [shape = 's32[1]{0}', space=sflag, size = 0x4, scoped, tag = 'scoped memory for tpu_custom_call.1']
    #allocation5 [shape = 'u8[65536]{0}', space=vmem, size = 0x10000, scoped, tag = 'input window, operand 1, single buffered']
    #allocation6 [shape = 's32[1]{0}', space=sflag, size = 0x4, scoped, tag = 'scoped memory for tpu_custom_call.1']
    #allocation7 [shape = 'u8[32768]{0}', space=vmem, size = 0x8000, scoped, tag = 'input window, operand 2, single buffered']
    #allocation8 [shape = 'u8[8192]{0}', space=vmem, size = 0x2000, scoped, tag = 'output window, operand 0, single buffered']
    %8 = vsyncpa [#allocation3], 0
    %9 = vsyncpa [#allocation6], 0
    %10 = vsyncpa [#allocation4], 0
    // Predicated region
    $region2: #{tpu_custom_call.1} parent=1 // pred_check
      _
    $region3: #{tpu_custom_call.1} parent=1 // pred_check_branch
      %12 = sbr.rel (0) target = $region5
    $region4: #{tpu_custom_call.1} parent=1 // pred_region
      %14 = vsyncadd [#allocation3], 0
      %s15 = sshll.u32 %s0, 4
      %s16 = int_to_ptr.hbm [resolvable:$true] %s15
      %s17 = sshll.u32 [#allocation2], 4
      %s18 = int_to_ptr.vmem [resolvable:$true] %s17
      %23 = dma.hbm_to_vmem [thread:$0]  %s16, 128, %s18, [#allocation3], 64, 64, 4
    $region5: #{tpu_custom_call.1} parent=1 // pred_fallthru
      _
    // Predicated region
    $region6: #{tpu_custom_call.1} parent=1 // pred_check
      _
    $region7: #{tpu_custom_call.1} parent=1 // pred_check_branch
      %25 = sbr.rel (0) target = $region9
    $region8: #{tpu_custom_call.1} parent=1 // pred_region
      %27 = vsyncadd [#allocation6], 0
      %s28 = sshll.u32 %s1, 4
      %s29 = int_to_ptr.hbm [resolvable:$true] %s28
      %s30 = sshll.u32 [#allocation5], 4
      %s31 = int_to_ptr.vmem [resolvable:$true] %s30
      %36 = dma.hbm_to_vmem [thread:$0]  %s29, 2048, %s31, [#allocation6], 128, 128, 8
    $region9: #{tpu_custom_call.1} parent=1 // pred_fallthru
      _
    // Predicated region
    $region10: #{tpu_custom_call.1} parent=1 // pred_check
      _
    $region11: #{tpu_custom_call.1} parent=1 // pred_check_branch
      %38 = sbr.rel (0) target = $region13
    $region12: #{tpu_custom_call.1} parent=1 // pred_region
      %40 = vsyncadd [#allocation6], 0
      %s41 = sshll.u32 %s2, 4
      %s42 = int_to_ptr.hbm [resolvable:$true] %s41
      %s43 = sshll.u32 [#allocation7], 4
      %s44 = int_to_ptr.vmem [resolvable:$true] %s43
      %49 = dma.hbm_to_vmem [thread:$0]  %s42, 1024, %s44, [#allocation6], 64, 64, 4
    $region13: #{tpu_custom_call.1} parent=1 // pred_fallthru
      _
    // Predicated region
    $region14: #{tpu_custom_call.1} parent=1 // pred_check
      _
    $region15: #{tpu_custom_call.1} parent=1 // pred_check_branch
      %51 = sbr.rel (0) target = $region17
    $region16: #{tpu_custom_call.1} parent=1 // pred_region
      %53 = dma.done [#allocation3], 128
    $region17: #{tpu_custom_call.1} parent=1 // pred_fallthru
      _
    // Predicated region
    $region18: #{tpu_custom_call.1} parent=1 // pred_check
      _
    $region19: #{tpu_custom_call.1} parent=1 // pred_check_branch
      %55 = sbr.rel (0) target = $region21
    $region20: #{tpu_custom_call.1} parent=1 // pred_region
      %57 = dma.done [#allocation6], 2048
    $region21: #{tpu_custom_call.1} parent=1 // pred_fallthru
      _
    // Predicated region
    $region22: #{tpu_custom_call.1} parent=1 // pred_check
      _
    $region23: #{tpu_custom_call.1} parent=1 // pred_check_branch
      %59 = sbr.rel (0) target = $region25
    $region24: #{tpu_custom_call.1} parent=1 // pred_region
      %61 = dma.done [#allocation6], 1024
    $region25: #{tpu_custom_call.1} parent=1 // pred_fallthru
      _
    %v62 = vld [vmem:[#allocation2] sm:$0xf]
    %v63 = vld [vmem:[#allocation2 + $0x4] sm:$0xf]
    %v64 = vld [vmem:[#allocation5] sm:$0xff]
    %v65 = vld [vmem:[#allocation5 + $0x8] sm:$0xff]
    %v66 = vld [vmem:[#allocation5 + $0x10] sm:$0xff]
    %v67 = vld [vmem:[#allocation5 + $0x18] sm:$0xff]
    %v68 = vld [vmem:[#allocation5 + $0x20] sm:$0xff]
    %v69 = vld [vmem:[#allocation5 + $0x28] sm:$0xff]
    %v70 = vld [vmem:[#allocation5 + $0x30] sm:$0xff]
    %v71 = vld [vmem:[#allocation5 + $0x38] sm:$0xff]
    %v72 = vld [vmem:[#allocation5 + $0x40] sm:$0xff]
    %v73 = vld [vmem:[#allocation5 + $0x48] sm:$0xff]
    %v74 = vld [vmem:[#allocation5 + $0x50] sm:$0xff]
    %v75 = vld [vmem:[#allocation5 + $0x58] sm:$0xff]
    %v76 = vld [vmem:[#allocation5 + $0x60] sm:$0xff]
    %v77 = vld [vmem:[#allocation5 + $0x68] sm:$0xff]
    %v78 = vld [vmem:[#allocation5 + $0x70] sm:$0xff]
    %v79 = vld [vmem:[#allocation5 + $0x78] sm:$0xff]
    %v82 = vunpack.c.l.b16 %v62
    %v83 = vunpack.c.l.b16 %v63
    %v84 = vpack.c.b16 %v83, %v82
    %v102 = vunpack.c.l.b16 %v64
    %v103 = vunpack.c.h.b16 %v64
    %v104 = vunpack.c.l.b16 %v65
    %v105 = vunpack.c.h.b16 %v65
    %v106 = vunpack.c.l.b16 %v66
    %v107 = vunpack.c.h.b16 %v66
    %v108 = vunpack.c.l.b16 %v67
    %v109 = vunpack.c.h.b16 %v67
    %v110 = vunpack.c.l.b16 %v68
    %v111 = vunpack.c.h.b16 %v68
    %v112 = vunpack.c.l.b16 %v69
    %v113 = vunpack.c.h.b16 %v69
    %v114 = vunpack.c.l.b16 %v70
    %v115 = vunpack.c.h.b16 %v70
    %v116 = vunpack.c.l.b16 %v71
    %v117 = vunpack.c.h.b16 %v71
    %v118 = vunpack.c.l.b16 %v72
    %v119 = vunpack.c.h.b16 %v72
    %v120 = vunpack.c.l.b16 %v73
    %v121 = vunpack.c.h.b16 %v73
    %v122 = vunpack.c.l.b16 %v74
    %v123 = vunpack.c.h.b16 %v74
    %v124 = vunpack.c.l.b16 %v75
    %v125 = vunpack.c.h.b16 %v75
    %v126 = vunpack.c.l.b16 %v76
    %v127 = vunpack.c.h.b16 %v76
    %v128 = vunpack.c.l.b16 %v77
    %v129 = vunpack.c.h.b16 %v77
    %v130 = vunpack.c.l.b16 %v78
    %v131 = vunpack.c.h.b16 %v78
    %v132 = vunpack.c.l.b16 %v79
    %v133 = vunpack.c.h.b16 %v79
    %v134 = vpack.c.b16 %v104, %v102
    %v135 = vpack.c.b16 %v105, %v103
    %v136 = vpack.c.b16 %v108, %v106
    %v137 = vpack.c.b16 %v109, %v107
    %v138 = vpack.c.b16 %v112, %v110
    %v139 = vpack.c.b16 %v113, %v111
    %v140 = vpack.c.b16 %v116, %v114
    %v141 = vpack.c.b16 %v117, %v115
    %v142 = vpack.c.b16 %v120, %v118
    %v143 = vpack.c.b16 %v121, %v119
    %v144 = vpack.c.b16 %v124, %v122
    %v145 = vpack.c.b16 %v125, %v123
    %v146 = vpack.c.b16 %v128, %v126
    %v147 = vpack.c.b16 %v129, %v127
    %v148 = vpack.c.b16 %v132, %v130
    %v149 = vpack.c.b16 %v133, %v131
    %166 = vmatpush.bf16.msra.mxu0 %v148
    %167 = vmatpush.bf16.msra.mxu0 %v146
    %168 = vmatpush.bf16.msra.mxu0 %v144
    %169 = vmatpush.bf16.msra.mxu0 %v142
    %170 = vmatpush.bf16.msra.mxu0 %v140
    %171 = vmatpush.bf16.msra.mxu0 %v138
    %172 = vmatpush.bf16.msra.mxu0 %v136
    %173 = vmatpush.bf16.msra.mxu0 %v134
    %174 = vmatmul.bf16.gmra.mxu0 %v84
    %v175 = vpop.f32.mrf.mxu0
    %v176 = vadd.f32 0.0, %v175
    %v177 = vpop.f32.mrf.mxu0
    %v178 = vadd.f32 0.0, %v177
    %179 = vdwg.mxu0
    %180 = vmatpush.bf16.msra.mxu0 %v149
    %181 = vmatpush.bf16.msra.mxu0 %v147
    %182 = vmatpush.bf16.msra.mxu0 %v145
    %183 = vmatpush.bf16.msra.mxu0 %v143
    %184 = vmatpush.bf16.msra.mxu0 %v141
    %185 = vmatpush.bf16.msra.mxu0 %v139
    %186 = vmatpush.bf16.msra.mxu0 %v137
    %187 = vmatpush.bf16.msra.mxu0 %v135
    %188 = vmatmul.bf16.gmra.mxu0 %v84
    %v189 = vpop.f32.mrf.mxu0
    %v190 = vadd.f32 0.0, %v189
    %v191 = vpop.f32.mrf.mxu0
    %v192 = vadd.f32 0.0, %v191
    %193 = vdwg.mxu0
    %v194 = vxor.u32 %v176, 2147483648
    %v195 = vxor.u32 %v178, 2147483648
    %v196 = vmul.f32 %v194, 1.442695
    %v197 = vpow.pop %v196
    %v198 = vmul.f32 %v195, 1.442695
    %v199 = vpow.pop %v198
    %v200 = vadd.f32 %v197, 1.0
    %v201 = vadd.f32 %v199, 1.0
    %v202 = vrcp.pop %v200
    %v203 = vmul.f32 %v200, %v202
    %v204 = vsub.f32 1.0, %v203
    %v205 = vmul.f32 %v202, %v204
    %v206 = vadd.f32 %v202, %v205
    %vm207 = vweird.f32 %v200
    %vm208 = vweird.f32 %v202
    %vm209 = vmor %vm207, %vm208
    %v210 = vsel %vm209, %v202, %v206
    %v211 = vand.u32 2147483647, %v200
    %vm212 = vcmp.eq.f32.partialorder %v211, 8.507059e+37
    %v213 = vand.u32 %v200, 2147483648
    %v214 = vor.u32 1.1754944e-38, %v213
    %v215 = vsel %vm212, %v214, %v210
    %v216 = vmul.f32 1.0, %v215
    %v217 = vrcp.pop %v201
    %v218 = vmul.f32 %v201, %v217
    %v219 = vsub.f32 1.0, %v218
    %v220 = vmul.f32 %v217, %v219
    %v221 = vadd.f32 %v217, %v220
    %vm222 = vweird.f32 %v201
    %vm223 = vweird.f32 %v217
    %vm224 = vmor %vm222, %vm223
    %v225 = vsel %vm224, %v217, %v221
    %v226 = vand.u32 2147483647, %v201
    %vm227 = vcmp.eq.f32.partialorder %v226, 8.507059e+37
    %v228 = vand.u32 %v201, 2147483648
    %v229 = vor.u32 1.1754944e-38, %v228
    %v230 = vsel %vm227, %v229, %v225
    %v231 = vmul.f32 1.0, %v230
    %v232 = vmul.f32 %v176, %v216
    %v233 = vmul.f32 %v178, %v231
    %v234 = vmul.f32 %v232, %v190
    %v235 = vmul.f32 %v233, %v192
    %v236 = vpack.c.bf16 %v235, %v234
    %v237 = vld [vmem:[#allocation7] sm:$0xf]
    %v238 = vld [vmem:[#allocation7 + $0x4] sm:$0xf]
    %v239 = vld [vmem:[#allocation7 + $0x8] sm:$0xf]
    %v240 = vld [vmem:[#allocation7 + $0xc] sm:$0xf]
    %v241 = vld [vmem:[#allocation7 + $0x10] sm:$0xf]
    %v242 = vld [vmem:[#allocation7 + $0x14] sm:$0xf]
    %v243 = vld [vmem:[#allocation7 + $0x18] sm:$0xf]
    %v244 = vld [vmem:[#allocation7 + $0x1c] sm:$0xf]
    %v245 = vld [vmem:[#allocation7 + $0x20] sm:$0xf]
    %v246 = vld [vmem:[#allocation7 + $0x24] sm:$0xf]
    %v247 = vld [vmem:[#allocation7 + $0x28] sm:$0xf]
    %v248 = vld [vmem:[#allocation7 + $0x2c] sm:$0xf]
    %v249 = vld [vmem:[#allocation7 + $0x30] sm:$0xf]
    %v250 = vld [vmem:[#allocation7 + $0x34] sm:$0xf]
    %v251 = vld [vmem:[#allocation7 + $0x38] sm:$0xf]
    %v252 = vld [vmem:[#allocation7 + $0x3c] sm:$0xf]
    %v269 = vunpack.c.l.b16 %v237
    %v270 = vunpack.c.l.b16 %v238
    %v271 = vunpack.c.l.b16 %v239
    %v272 = vunpack.c.l.b16 %v240
    %v273 = vunpack.c.l.b16 %v241
    %v274 = vunpack.c.l.b16 %v242
    %v275 = vunpack.c.l.b16 %v243
    %v276 = vunpack.c.l.b16 %v244
    %v277 = vunpack.c.l.b16 %v245
    %v278 = vunpack.c.l.b16 %v246
    %v279 = vunpack.c.l.b16 %v247
    %v280 = vunpack.c.l.b16 %v248
    %v281 = vunpack.c.l.b16 %v249
    %v282 = vunpack.c.l.b16 %v250
    %v283 = vunpack.c.l.b16 %v251
    %v284 = vunpack.c.l.b16 %v252
    %v285 = vpack.c.b16 %v270, %v269
    %v286 = vpack.c.b16 %v272, %v271
    %v287 = vpack.c.b16 %v274, %v273
    %v288 = vpack.c.b16 %v276, %v275
    %v289 = vpack.c.b16 %v278, %v277
    %v290 = vpack.c.b16 %v280, %v279
    %v291 = vpack.c.b16 %v282, %v281
    %v292 = vpack.c.b16 %v284, %v283
    %301 = vmatpush.bf16.msra.mxu0 %v292
    %302 = vmatpush.bf16.msra.mxu0 %v291
    %303 = vmatpush.bf16.msra.mxu0 %v290
    %304 = vmatpush.bf16.msra.mxu0 %v289
    %305 = vmatpush.bf16.msra.mxu0 %v288
    %306 = vmatpush.bf16.msra.mxu0 %v287
    %307 = vmatpush.bf16.msra.mxu0 %v286
    %308 = vmatpush.bf16.msra.mxu0 %v285
    %309 = vmatmul.bf16.gmra.mxu0 %v236
    %v310 = vpop.f32.mrf.mxu0
    %v311 = vadd.f32 0.0, %v310
    %v312 = vpop.f32.mrf.mxu0
    %v313 = vadd.f32 0.0, %v312
    %314 = vdwg.mxu0
    %315 = vst [vmem:[#allocation8] sm:$0xff] %v311
    %316 = vst [vmem:[#allocation8 + $0x8] sm:$0xff] %v313
    // Predicated region
    $region26: #{tpu_custom_call.1} parent=1 // pred_check
      _
    $region27: #{tpu_custom_call.1} parent=1 // pred_check_branch
      %318 = sbr.rel (0) target = $region29
    $region28: #{tpu_custom_call.1} parent=1 // pred_region
      %320 = vsyncadd [#allocation4], 0
      %s321 = sshll.u32 [#allocation8], 4
      %s322 = int_to_ptr.vmem [resolvable:$true] %s321
      %s323 = sshll.u32 %s3, 4
      %s324 = int_to_ptr.hbm [resolvable:$true] %s323
      %329 = dma.vmem_to_hbm [thread:$0]  %s322, 256, %s324, [#allocation4], 128, 128, 8
    $region29: #{tpu_custom_call.1} parent=1 // pred_fallthru
      _
    // Predicated region
    $region30: #{tpu_custom_call.1} parent=1 // pred_check
      _
    $region31: #{tpu_custom_call.1} parent=1 // pred_check_branch
      %331 = sbr.rel (0) target = $region33
    $region32: #{tpu_custom_call.1} parent=1 // pred_region
      %333 = dma.done [#allocation4], 256
    $region33: #{tpu_custom_call.1} parent=1 // pred_fallthru
      _
    %334 = vsyncpa [#allocation3], 1
    %335 = vsyncpa [#allocation6], 1
    %336 = vsyncpa [#allocation4], 1

</llo_original>
